<compile_context>
chip_gen: v5e
topology: v5e:2x2
jax: 0.10.0
libtpu: 0.0.40
codegen_flags: <defaults>
</compile_context>

<pallas_src>
from functools import partial

import jax
import jax.numpy as jnp
import numpy as np
from jax.experimental import pallas as pl
from jax.experimental.pallas import tpu as pltpu


def _lstm_fc_kernel(x_ref, wih_ref, whh_ref, b_ref, wfc_ref, bfc_ref,
                    out_ref, xg_ref, *, batch):
    """x_ref: (T*B, D_in) time-major-collapsed input, f32.
    wih_ref: (D_in, 4H) f32   (gate cols [i,f,o,g], g cols pre-scaled by 2)
    whh_ref: (H, 4H)   bf16   (same layout/scaling)
    b_ref:   (1, 4H)   f32    (b_ih + b_hh, permuted + scaled)
    wfc_ref: (H, O) f32, bfc_ref: (1, O) f32, out_ref: (B, O) f32
    xg_ref:  (T*B, 4H) f32 VMEM scratch."""
    B = batch
    H = whh_ref.shape[0]
    T = x_ref.shape[0] // B

    # Hoisted, batched input projection for ALL timesteps (off the serial
    # recurrence path); parked in VMEM scratch instead of vregs.
    xg_ref[...] = (jnp.dot(x_ref[...], wih_ref[...],
                           preferred_element_type=jnp.float32)
                   + b_ref[...])

    h = jnp.zeros((B, H), jnp.float32)
    c = jnp.zeros((B, H), jnp.float32)

    # Statically unrolled recurrence: exactly one small bf16 MXU matmul and
    # two EUP passes (sigmoid over 4H, tanh over H) per step.
    for t in range(T):
        xg_t = xg_ref[pl.ds(t * B, B), :]                       # (B, 4H), f32
        # W_hh stays behind its ref (vld is cheap; avoids pinning vregs).
        gates = xg_t + jnp.dot(h.astype(jnp.bfloat16), whh_ref[...],
                               preferred_element_type=jnp.float32)
        sig = jax.nn.sigmoid(gates)          # single EUP pass, lane-aligned 4H
        i_g = sig[:, 0 * H:1 * H]
        f_g = sig[:, 1 * H:2 * H]
        o_g = sig[:, 2 * H:3 * H]
        g_g = 2.0 * sig[:, 3 * H:4 * H] - 1.0   # tanh(x) = 2*sigmoid(2x) - 1
        c = f_g * c + i_g * g_g
        h = o_g * jnp.tanh(c)

    # LeakyReLU (negative_slope=0.01) on the last hidden state, then fc.
    a = jnp.where(h > 0, h, 0.01 * h)
    out_ref[...] = (jnp.dot(a, wfc_ref[...], preferred_element_type=jnp.float32)
                    + bfc_ref[...]).astype(out_ref.dtype)


@jax.jit
def qnetwork_forward(x, packed):
    """x: (B, T, D_in) float32, batch_first like the PyTorch module."""
    w_ih_t, w_hh_t, b_gates, w_fc_t, b_fc = packed
    B, T, D_in = x.shape
    H4 = w_ih_t.shape[1]
    O = w_fc_t.shape[1]

    # Layout prep is fused into this jit (no separate eager dispatches):
    # time-major + collapse leading dims so the kernel's input projection is
    # one (T*B, D_in) @ (D_in, 4H) matmul and per-step rows are contiguous.
    x2d = jnp.transpose(x, (1, 0, 2)).reshape(T * B, D_in)

    vmem = pltpu.MemorySpace.VMEM
    # TODO(synk): if B/T ever scale (RL training batches), add a batch grid
    # axis with dimension_semantics=("parallel",) for v7x megacore and budget
    # the (T*B, 4H) scratch against vmem_limit_bytes; at these sizes (<1 MiB)
    # a single gridless invocation is optimal on v5e/v6e/v7x.
    return pl.pallas_call(
        partial(_lstm_fc_kernel, batch=B),
        out_shape=jax.ShapeDtypeStruct((B, O), jnp.float32),
        in_specs=[pl.BlockSpec(memory_space=vmem)] * 6,
        out_specs=pl.BlockSpec(memory_space=vmem),
        scratch_shapes=[pltpu.VMEM((T * B, H4), jnp.float32)],
    )(x2d, w_ih_t, w_hh_t, b_gates, w_fc_t, b_fc)


def init_params(key, input_dim, output_dim, hidden_dim=64):
    """Raw PyTorch-shaped parameters (nn.LSTM 1 layer + nn.Linear)."""
    ks = jax.random.split(key, 6)
    bound = 1.0 / np.sqrt(hidden_dim)
    u = lambda k, s: jax.random.uniform(k, s, jnp.float32, -bound, bound)
    w_ih = u(ks[0], (4 * hidden_dim, input_dim))   # weight_ih_l0, rows [i,f,g,o]
    w_hh = u(ks[1], (4 * hidden_dim, hidden_dim))  # weight_hh_l0
    b_ih = u(ks[2], (4 * hidden_dim,))
    b_hh = u(ks[3], (4 * hidden_dim,))
    w_fc = u(ks[4], (output_dim, hidden_dim))
    b_fc = u(ks[5], (output_dim,))
    return (w_ih, w_hh, b_ih, b_hh, w_fc, b_fc)


def pack_params(raw, hidden_dim):
    """Pack raw params for the kernel: permute gate blocks [i,f,g,o]->[i,f,o,g],
    pre-scale the g-gate rows by 2 (tanh-via-sigmoid), combine biases,
    pre-transpose weights, and store W_hh in bf16 for the recurrent matmul."""
    w_ih, w_hh, b_ih, b_hh, w_fc, b_fc = raw
    H = hidden_dim
    perm = jnp.asarray(np.concatenate([np.arange(0, H),          # i
                                       np.arange(H, 2 * H),      # f
                                       np.arange(3 * H, 4 * H),  # o
                                       np.arange(2 * H, 3 * H)]))  # g
    scale = jnp.concatenate([jnp.ones((3 * H,), jnp.float32),
                             jnp.full((H,), 2.0, jnp.float32)])   # x2 on g rows
    w_ih_p = (w_ih[perm, :] * scale[:, None]).T                   # (D_in, 4H) f32
    w_hh_p = (w_hh[perm, :] * scale[:, None]).T.astype(jnp.bfloat16)  # (H, 4H)
    b_p = ((b_ih + b_hh)[perm] * scale)[None, :]                  # (1, 4H) f32
    return (w_ih_p, w_hh_p, b_p, w_fc.T, b_fc[None, :])


def qnetwork_ref(x, raw):
    """Pure-JAX reference with exact PyTorch LSTM semantics on raw params."""
    w_ih, w_hh, b_ih, b_hh, w_fc, b_fc = raw
    H = w_hh.shape[1]

    def step(carry, x_t):
        h, c = carry
        gates = x_t @ w_ih.T + h @ w_hh.T + b_ih + b_hh
        i = jax.nn.sigmoid(gates[:, 0 * H:1 * H])
        f = jax.nn.sigmoid(gates[:, 1 * H:2 * H])
        g = jnp.tanh(gates[:, 2 * H:3 * H])
        o = jax.nn.sigmoid(gates[:, 3 * H:4 * H])
        c = f * c + i * g
        h = o * jnp.tanh(c)
        return (h, c), None

    B = x.shape[0]
    h0 = jnp.zeros((B, H), jnp.float32)
    (h, _), _ = jax.lax.scan(step, (h0, h0), jnp.transpose(x, (1, 0, 2)))
    a = jnp.where(h > 0, h, 0.01 * h)
    return a @ w_fc.T + b_fc


if __name__ == "__main__":
    B, T, INPUT_DIM, HIDDEN_DIM, OUTPUT_DIM = 2, 8, 16, 64, 4

    key = jax.random.PRNGKey(0)
    k_x, k_p = jax.random.split(key)
    x = jax.random.normal(k_x, (B, T, INPUT_DIM), jnp.float32)
    raw = init_params(k_p, INPUT_DIM, OUTPUT_DIM, HIDDEN_DIM)
    packed = pack_params(raw, HIDDEN_DIM)

    out = jax.block_until_ready(qnetwork_forward(x, packed))
    ref = qnetwork_ref(x, raw)

    # bf16 inputs on the recurrent matmul => rounding-level differences vs the
    # pure-f32 reference, so the tolerance is relaxed from 1e-4.
    np.testing.assert_allclose(np.asarray(out), np.asarray(ref),
                               rtol=2e-2, atol=2e-2)

    print("KERNEL_OK")
</pallas_src>

<mosaic_0001>
module attributes {stable_mosaic.version = 11 : i64} {
  func.func @_lstm_fc_kernel(%arg0: memref<16x16xf32, #tpu.memory_space<vmem>>, %arg1: memref<16x256xf32, #tpu.memory_space<vmem>>, %arg2: memref<64x256xbf16, #tpu.memory_space<vmem>>, %arg3: memref<1x256xf32, #tpu.memory_space<vmem>>, %arg4: memref<64x4xf32, #tpu.memory_space<vmem>>, %arg5: memref<1x4xf32, #tpu.memory_space<vmem>>, %arg6: memref<2x4xf32, #tpu.memory_space<vmem>>, %arg7: memref<16x256xf32, #tpu.memory_space<vmem>>) attributes {dimension_semantics = [], scalar_prefetch = 0 : i64, scratch_operands = 1 : i64, tpu.core_type = #tpu.core_type<tc>} {
    %c0 = arith.constant 0 : index
    %c0_0 = arith.constant 0 : index
    %0 = vector.load %arg0[%c0, %c0_0] : memref<16x16xf32, #tpu.memory_space<vmem>>, vector<16x16xf32>
    %c0_1 = arith.constant 0 : index
    %c0_2 = arith.constant 0 : index
    %1 = vector.load %arg1[%c0_1, %c0_2] : memref<16x256xf32, #tpu.memory_space<vmem>>, vector<16x256xf32>
    %cst = arith.constant dense<0.000000e+00> : vector<16x256xf32>
    %2 = tpu.matmul %0, %1, %cst {dimension_numbers = #tpu.dot_dimension_numbers<[1], [0], [0], [1], [0, 0, 1, 1], [], []>} : vector<16x16xf32>, vector<16x256xf32>, vector<16x256xf32> -> vector<16x256xf32>
    %c0_3 = arith.constant 0 : index
    %c0_4 = arith.constant 0 : index
    %3 = vector.load %arg3[%c0_3, %c0_4] : memref<1x256xf32, #tpu.memory_space<vmem>>, vector<1x256xf32>
    %4 = vector.broadcast %3 : vector<1x256xf32> to vector<16x256xf32>
    %5 = arith.addf %2, %4 : vector<16x256xf32>
    %c0_5 = arith.constant 0 : index
    %c0_6 = arith.constant 0 : index
    %6 = vector.load %arg7[%c0_5, %c0_6] : memref<16x256xf32, #tpu.memory_space<vmem>>, vector<16x256xf32>
    tpu.vector_store %arg7[%c0_5, %c0_6], %5 {strides = array<i32>} : memref<16x256xf32, #tpu.memory_space<vmem>>, vector<16x256xf32>,
    %cst_7 = arith.constant 0.000000e+00 : f32
    %7 = vector.broadcast %cst_7 : f32 to vector<2x64xf32>
    %cst_8 = arith.constant 0.000000e+00 : f32
    %8 = vector.broadcast %cst_8 : f32 to vector<2x64xf32>
    %c0_9 = arith.constant 0 : index
    %c0_10 = arith.constant 0 : index
    %9 = vector.load %arg7[%c0_9, %c0_10] : memref<16x256xf32, #tpu.memory_space<vmem>>, vector<2x256xf32>
    %10 = arith.truncf %7 : vector<2x64xf32> to vector<2x64xbf16>
    %c0_11 = arith.constant 0 : index
    %c0_12 = arith.constant 0 : index
    %11 = vector.load %arg2[%c0_11, %c0_12] : memref<64x256xbf16, #tpu.memory_space<vmem>>, vector<64x256xbf16>
    %cst_13 = arith.constant dense<0.000000e+00> : vector<2x256xf32>
    %12 = tpu.matmul %10, %11, %cst_13 {dimension_numbers = #tpu.dot_dimension_numbers<[1], [0], [0], [1], [0, 0, 1, 1], [], []>} : vector<2x64xbf16>, vector<64x256xbf16>, vector<2x256xf32> -> vector<2x256xf32>
    %13 = arith.addf %9, %12 : vector<2x256xf32>
    %14 = arith.negf %13 : vector<2x256xf32>
    %15 = math.exp %14 : vector<2x256xf32>
    %cst_14 = arith.constant 1.000000e+00 : f32
    %16 = vector.broadcast %cst_14 : f32 to vector<2x256xf32>
    %17 = arith.addf %16, %15 : vector<2x256xf32>
    %18 = arith.divf %16, %17 : vector<2x256xf32>
    %19 = vector.extract_strided_slice %18 {offsets = [0, 0], sizes = [2, 64], strides = [1, 1]} : vector<2x256xf32> to vector<2x64xf32>
    %20 = vector.extract_strided_slice %18 {offsets = [0, 64], sizes = [2, 64], strides = [1, 1]} : vector<2x256xf32> to vector<2x64xf32>
    %21 = vector.extract_strided_slice %18 {offsets = [0, 128], sizes = [2, 64], strides = [1, 1]} : vector<2x256xf32> to vector<2x64xf32>
    %22 = vector.extract_strided_slice %18 {offsets = [0, 192], sizes = [2, 64], strides = [1, 1]} : vector<2x256xf32> to vector<2x64xf32>
    %cst_15 = arith.constant 2.000000e+00 : f32
    %23 = vector.broadcast %cst_15 : f32 to vector<2x64xf32>
    %24 = arith.mulf %23, %22 : vector<2x64xf32>
    %cst_16 = arith.constant 1.000000e+00 : f32
    %25 = vector.broadcast %cst_16 : f32 to vector<2x64xf32>
    %26 = arith.subf %24, %25 : vector<2x64xf32>
    %27 = arith.mulf %20, %8 : vector<2x64xf32>
    %28 = arith.mulf %19, %26 : vector<2x64xf32>
    %29 = arith.addf %27, %28 : vector<2x64xf32>
    %30 = math.tanh %29 : vector<2x64xf32>
    %31 = arith.mulf %21, %30 : vector<2x64xf32>
    %c2 = arith.constant 2 : index
    %c0_17 = arith.constant 0 : index
    %32 = vector.load %arg7[%c2, %c0_17] : memref<16x256xf32, #tpu.memory_space<vmem>>, vector<2x256xf32>
    %33 = arith.truncf %31 : vector<2x64xf32> to vector<2x64xbf16>
    %c0_18 = arith.constant 0 : index
    %c0_19 = arith.constant 0 : index
    %34 = vector.load %arg2[%c0_18, %c0_19] : memref<64x256xbf16, #tpu.memory_space<vmem>>, vector<64x256xbf16>
    %cst_20 = arith.constant dense<0.000000e+00> : vector<2x256xf32>
    %35 = tpu.matmul %33, %34, %cst_20 {dimension_numbers = #tpu.dot_dimension_numbers<[1], [0], [0], [1], [0, 0, 1, 1], [], []>} : vector<2x64xbf16>, vector<64x256xbf16>, vector<2x256xf32> -> vector<2x256xf32>
    %36 = arith.addf %32, %35 : vector<2x256xf32>
    %37 = arith.negf %36 : vector<2x256xf32>
    %38 = math.exp %37 : vector<2x256xf32>
    %cst_21 = arith.constant 1.000000e+00 : f32
    %39 = vector.broadcast %cst_21 : f32 to vector<2x256xf32>
    %40 = arith.addf %39, %38 : vector<2x256xf32>
    %41 = arith.divf %39, %40 : vector<2x256xf32>
    %42 = vector.extract_strided_slice %41 {offsets = [0, 0], sizes = [2, 64], strides = [1, 1]} : vector<2x256xf32> to vector<2x64xf32>
    %43 = vector.extract_strided_slice %41 {offsets = [0, 64], sizes = [2, 64], strides = [1, 1]} : vector<2x256xf32> to vector<2x64xf32>
    %44 = vector.extract_strided_slice %41 {offsets = [0, 128], sizes = [2, 64], strides = [1, 1]} : vector<2x256xf32> to vector<2x64xf32>
    %45 = vector.extract_strided_slice %41 {offsets = [0, 192], sizes = [2, 64], strides = [1, 1]} : vector<2x256xf32> to vector<2x64xf32>
    %cst_22 = arith.constant 2.000000e+00 : f32
    %46 = vector.broadcast %cst_22 : f32 to vector<2x64xf32>
    %47 = arith.mulf %46, %45 : vector<2x64xf32>
    %cst_23 = arith.constant 1.000000e+00 : f32
    %48 = vector.broadcast %cst_23 : f32 to vector<2x64xf32>
    %49 = arith.subf %47, %48 : vector<2x64xf32>
    %50 = arith.mulf %43, %29 : vector<2x64xf32>
    %51 = arith.mulf %42, %49 : vector<2x64xf32>
    %52 = arith.addf %50, %51 : vector<2x64xf32>
    %53 = math.tanh %52 : vector<2x64xf32>
    %54 = arith.mulf %44, %53 : vector<2x64xf32>
    %c4 = arith.constant 4 : index
    %c0_24 = arith.constant 0 : index
    %55 = vector.load %arg7[%c4, %c0_24] : memref<16x256xf32, #tpu.memory_space<vmem>>, vector<2x256xf32>
    %56 = arith.truncf %54 : vector<2x64xf32> to vector<2x64xbf16>
    %c0_25 = arith.constant 0 : index
    %c0_26 = arith.constant 0 : index
    %57 = vector.load %arg2[%c0_25, %c0_26] : memref<64x256xbf16, #tpu.memory_space<vmem>>, vector<64x256xbf16>
    %cst_27 = arith.constant dense<0.000000e+00> : vector<2x256xf32>
    %58 = tpu.matmul %56, %57, %cst_27 {dimension_numbers = #tpu.dot_dimension_numbers<[1], [0], [0], [1], [0, 0, 1, 1], [], []>} : vector<2x64xbf16>, vector<64x256xbf16>, vector<2x256xf32> -> vector<2x256xf32>
    %59 = arith.addf %55, %58 : vector<2x256xf32>
    %60 = arith.negf %59 : vector<2x256xf32>
    %61 = math.exp %60 : vector<2x256xf32>
    %cst_28 = arith.constant 1.000000e+00 : f32
    %62 = vector.broadcast %cst_28 : f32 to vector<2x256xf32>
    %63 = arith.addf %62, %61 : vector<2x256xf32>
    %64 = arith.divf %62, %63 : vector<2x256xf32>
    %65 = vector.extract_strided_slice %64 {offsets = [0, 0], sizes = [2, 64], strides = [1, 1]} : vector<2x256xf32> to vector<2x64xf32>
    %66 = vector.extract_strided_slice %64 {offsets = [0, 64], sizes = [2, 64], strides = [1, 1]} : vector<2x256xf32> to vector<2x64xf32>
    %67 = vector.extract_strided_slice %64 {offsets = [0, 128], sizes = [2, 64], strides = [1, 1]} : vector<2x256xf32> to vector<2x64xf32>
    %68 = vector.extract_strided_slice %64 {offsets = [0, 192], sizes = [2, 64], strides = [1, 1]} : vector<2x256xf32> to vector<2x64xf32>
    %cst_29 = arith.constant 2.000000e+00 : f32
    %69 = vector.broadcast %cst_29 : f32 to vector<2x64xf32>
    %70 = arith.mulf %69, %68 : vector<2x64xf32>
    %cst_30 = arith.constant 1.000000e+00 : f32
    %71 = vector.broadcast %cst_30 : f32 to vector<2x64xf32>
    %72 = arith.subf %70, %71 : vector<2x64xf32>
    %73 = arith.mulf %66, %52 : vector<2x64xf32>
    %74 = arith.mulf %65, %72 : vector<2x64xf32>
    %75 = arith.addf %73, %74 : vector<2x64xf32>
    %76 = math.tanh %75 : vector<2x64xf32>
    %77 = arith.mulf %67, %76 : vector<2x64xf32>
    %c6 = arith.constant 6 : index
    %c0_31 = arith.constant 0 : index
    %78 = vector.load %arg7[%c6, %c0_31] : memref<16x256xf32, #tpu.memory_space<vmem>>, vector<2x256xf32>
    %79 = arith.truncf %77 : vector<2x64xf32> to vector<2x64xbf16>
    %c0_32 = arith.constant 0 : index
    %c0_33 = arith.constant 0 : index
    %80 = vector.load %arg2[%c0_32, %c0_33] : memref<64x256xbf16, #tpu.memory_space<vmem>>, vector<64x256xbf16>
    %cst_34 = arith.constant dense<0.000000e+00> : vector<2x256xf32>
    %81 = tpu.matmul %79, %80, %cst_34 {dimension_numbers = #tpu.dot_dimension_numbers<[1], [0], [0], [1], [0, 0, 1, 1], [], []>} : vector<2x64xbf16>, vector<64x256xbf16>, vector<2x256xf32> -> vector<2x256xf32>
    %82 = arith.addf %78, %81 : vector<2x256xf32>
    %83 = arith.negf %82 : vector<2x256xf32>
    %84 = math.exp %83 : vector<2x256xf32>
    %cst_35 = arith.constant 1.000000e+00 : f32
    %85 = vector.broadcast %cst_35 : f32 to vector<2x256xf32>
    %86 = arith.addf %85, %84 : vector<2x256xf32>
    %87 = arith.divf %85, %86 : vector<2x256xf32>
    %88 = vector.extract_strided_slice %87 {offsets = [0, 0], sizes = [2, 64], strides = [1, 1]} : vector<2x256xf32> to vector<2x64xf32>
    %89 = vector.extract_strided_slice %87 {offsets = [0, 64], sizes = [2, 64], strides = [1, 1]} : vector<2x256xf32> to vector<2x64xf32>
    %90 = vector.extract_strided_slice %87 {offsets = [0, 128], sizes = [2, 64], strides = [1, 1]} : vector<2x256xf32> to vector<2x64xf32>
    %91 = vector.extract_strided_slice %87 {offsets = [0, 192], sizes = [2, 64], strides = [1, 1]} : vector<2x256xf32> to vector<2x64xf32>
    %cst_36 = arith.constant 2.000000e+00 : f32
    %92 = vector.broadcast %cst_36 : f32 to vector<2x64xf32>
    %93 = arith.mulf %92, %91 : vector<2x64xf32>
    %cst_37 = arith.constant 1.000000e+00 : f32
    %94 = vector.broadcast %cst_37 : f32 to vector<2x64xf32>
    %95 = arith.subf %93, %94 : vector<2x64xf32>
    %96 = arith.mulf %89, %75 : vector<2x64xf32>
    %97 = arith.mulf %88, %95 : vector<2x64xf32>
    %98 = arith.addf %96, %97 : vector<2x64xf32>
    %99 = math.tanh %98 : vector<2x64xf32>
    %100 = arith.mulf %90, %99 : vector<2x64xf32>
    %c8 = arith.constant 8 : index
    %c0_38 = arith.constant 0 : index
    %101 = vector.load %arg7[%c8, %c0_38] : memref<16x256xf32, #tpu.memory_space<vmem>>, vector<2x256xf32>
    %102 = arith.truncf %100 : vector<2x64xf32> to vector<2x64xbf16>
    %c0_39 = arith.constant 0 : index
    %c0_40 = arith.constant 0 : index
    %103 = vector.load %arg2[%c0_39, %c0_40] : memref<64x256xbf16, #tpu.memory_space<vmem>>, vector<64x256xbf16>
    %cst_41 = arith.constant dense<0.000000e+00> : vector<2x256xf32>
    %104 = tpu.matmul %102, %103, %cst_41 {dimension_numbers = #tpu.dot_dimension_numbers<[1], [0], [0], [1], [0, 0, 1, 1], [], []>} : vector<2x64xbf16>, vector<64x256xbf16>, vector<2x256xf32> -> vector<2x256xf32>
    %105 = arith.addf %101, %104 : vector<2x256xf32>
    %106 = arith.negf %105 : vector<2x256xf32>
    %107 = math.exp %106 : vector<2x256xf32>
    %cst_42 = arith.constant 1.000000e+00 : f32
    %108 = vector.broadcast %cst_42 : f32 to vector<2x256xf32>
    %109 = arith.addf %108, %107 : vector<2x256xf32>
    %110 = arith.divf %108, %109 : vector<2x256xf32>
    %111 = vector.extract_strided_slice %110 {offsets = [0, 0], sizes = [2, 64], strides = [1, 1]} : vector<2x256xf32> to vector<2x64xf32>
    %112 = vector.extract_strided_slice %110 {offsets = [0, 64], sizes = [2, 64], strides = [1, 1]} : vector<2x256xf32> to vector<2x64xf32>
    %113 = vector.extract_strided_slice %110 {offsets = [0, 128], sizes = [2, 64], strides = [1, 1]} : vector<2x256xf32> to vector<2x64xf32>
    %114 = vector.extract_strided_slice %110 {offsets = [0, 192], sizes = [2, 64], strides = [1, 1]} : vector<2x256xf32> to vector<2x64xf32>
    %cst_43 = arith.constant 2.000000e+00 : f32
    %115 = vector.broadcast %cst_43 : f32 to vector<2x64xf32>
    %116 = arith.mulf %115, %114 : vector<2x64xf32>
    %cst_44 = arith.constant 1.000000e+00 : f32
    %117 = vector.broadcast %cst_44 : f32 to vector<2x64xf32>
    %118 = arith.subf %116, %117 : vector<2x64xf32>
    %119 = arith.mulf %112, %98 : vector<2x64xf32>
    %120 = arith.mulf %111, %118 : vector<2x64xf32>
    %121 = arith.addf %119, %120 : vector<2x64xf32>
    %122 = math.tanh %121 : vector<2x64xf32>
    %123 = arith.mulf %113, %122 : vector<2x64xf32>
    %c10 = arith.constant 10 : index
    %c0_45 = arith.constant 0 : index
    %124 = vector.load %arg7[%c10, %c0_45] : memref<16x256xf32, #tpu.memory_space<vmem>>, vector<2x256xf32>
    %125 = arith.truncf %123 : vector<2x64xf32> to vector<2x64xbf16>
    %c0_46 = arith.constant 0 : index
    %c0_47 = arith.constant 0 : index
    %126 = vector.load %arg2[%c0_46, %c0_47] : memref<64x256xbf16, #tpu.memory_space<vmem>>, vector<64x256xbf16>
    %cst_48 = arith.constant dense<0.000000e+00> : vector<2x256xf32>
    %127 = tpu.matmul %125, %126, %cst_48 {dimension_numbers = #tpu.dot_dimension_numbers<[1], [0], [0], [1], [0, 0, 1, 1], [], []>} : vector<2x64xbf16>, vector<64x256xbf16>, vector<2x256xf32> -> vector<2x256xf32>
    %128 = arith.addf %124, %127 : vector<2x256xf32>
    %129 = arith.negf %128 : vector<2x256xf32>
    %130 = math.exp %129 : vector<2x256xf32>
    %cst_49 = arith.constant 1.000000e+00 : f32
    %131 = vector.broadcast %cst_49 : f32 to vector<2x256xf32>
    %132 = arith.addf %131, %130 : vector<2x256xf32>
    %133 = arith.divf %131, %132 : vector<2x256xf32>
    %134 = vector.extract_strided_slice %133 {offsets = [0, 0], sizes = [2, 64], strides = [1, 1]} : vector<2x256xf32> to vector<2x64xf32>
    %135 = vector.extract_strided_slice %133 {offsets = [0, 64], sizes = [2, 64], strides = [1, 1]} : vector<2x256xf32> to vector<2x64xf32>
    %136 = vector.extract_strided_slice %133 {offsets = [0, 128], sizes = [2, 64], strides = [1, 1]} : vector<2x256xf32> to vector<2x64xf32>
    %137 = vector.extract_strided_slice %133 {offsets = [0, 192], sizes = [2, 64], strides = [1, 1]} : vector<2x256xf32> to vector<2x64xf32>
    %cst_50 = arith.constant 2.000000e+00 : f32
    %138 = vector.broadcast %cst_50 : f32 to vector<2x64xf32>
    %139 = arith.mulf %138, %137 : vector<2x64xf32>
    %cst_51 = arith.constant 1.000000e+00 : f32
    %140 = vector.broadcast %cst_51 : f32 to vector<2x64xf32>
    %141 = arith.subf %139, %140 : vector<2x64xf32>
    %142 = arith.mulf %135, %121 : vector<2x64xf32>
    %143 = arith.mulf %134, %141 : vector<2x64xf32>
    %144 = arith.addf %142, %143 : vector<2x64xf32>
    %145 = math.tanh %144 : vector<2x64xf32>
    %146 = arith.mulf %136, %145 : vector<2x64xf32>
    %c12 = arith.constant 12 : index
    %c0_52 = arith.constant 0 : index
    %147 = vector.load %arg7[%c12, %c0_52] : memref<16x256xf32, #tpu.memory_space<vmem>>, vector<2x256xf32>
    %148 = arith.truncf %146 : vector<2x64xf32> to vector<2x64xbf16>
    %c0_53 = arith.constant 0 : index
    %c0_54 = arith.constant 0 : index
    %149 = vector.load %arg2[%c0_53, %c0_54] : memref<64x256xbf16, #tpu.memory_space<vmem>>, vector<64x256xbf16>
    %cst_55 = arith.constant dense<0.000000e+00> : vector<2x256xf32>
    %150 = tpu.matmul %148, %149, %cst_55 {dimension_numbers = #tpu.dot_dimension_numbers<[1], [0], [0], [1], [0, 0, 1, 1], [], []>} : vector<2x64xbf16>, vector<64x256xbf16>, vector<2x256xf32> -> vector<2x256xf32>
    %151 = arith.addf %147, %150 : vector<2x256xf32>
    %152 = arith.negf %151 : vector<2x256xf32>
    %153 = math.exp %152 : vector<2x256xf32>
    %cst_56 = arith.constant 1.000000e+00 : f32
    %154 = vector.broadcast %cst_56 : f32 to vector<2x256xf32>
    %155 = arith.addf %154, %153 : vector<2x256xf32>
    %156 = arith.divf %154, %155 : vector<2x256xf32>
    %157 = vector.extract_strided_slice %156 {offsets = [0, 0], sizes = [2, 64], strides = [1, 1]} : vector<2x256xf32> to vector<2x64xf32>
    %158 = vector.extract_strided_slice %156 {offsets = [0, 64], sizes = [2, 64], strides = [1, 1]} : vector<2x256xf32> to vector<2x64xf32>
    %159 = vector.extract_strided_slice %156 {offsets = [0, 128], sizes = [2, 64], strides = [1, 1]} : vector<2x256xf32> to vector<2x64xf32>
    %160 = vector.extract_strided_slice %156 {offsets = [0, 192], sizes = [2, 64], strides = [1, 1]} : vector<2x256xf32> to vector<2x64xf32>
    %cst_57 = arith.constant 2.000000e+00 : f32
    %161 = vector.broadcast %cst_57 : f32 to vector<2x64xf32>
    %162 = arith.mulf %161, %160 : vector<2x64xf32>
    %cst_58 = arith.constant 1.000000e+00 : f32
    %163 = vector.broadcast %cst_58 : f32 to vector<2x64xf32>
    %164 = arith.subf %162, %163 : vector<2x64xf32>
    %165 = arith.mulf %158, %144 : vector<2x64xf32>
    %166 = arith.mulf %157, %164 : vector<2x64xf32>
    %167 = arith.addf %165, %166 : vector<2x64xf32>
    %168 = math.tanh %167 : vector<2x64xf32>
    %169 = arith.mulf %159, %168 : vector<2x64xf32>
    %c14 = arith.constant 14 : index
    %c0_59 = arith.constant 0 : index
    %170 = vector.load %arg7[%c14, %c0_59] : memref<16x256xf32, #tpu.memory_space<vmem>>, vector<2x256xf32>
    %171 = arith.truncf %169 : vector<2x64xf32> to vector<2x64xbf16>
    %c0_60 = arith.constant 0 : index
    %c0_61 = arith.constant 0 : index
    %172 = vector.load %arg2[%c0_60, %c0_61] : memref<64x256xbf16, #tpu.memory_space<vmem>>, vector<64x256xbf16>
    %cst_62 = arith.constant dense<0.000000e+00> : vector<2x256xf32>
    %173 = tpu.matmul %171, %172, %cst_62 {dimension_numbers = #tpu.dot_dimension_numbers<[1], [0], [0], [1], [0, 0, 1, 1], [], []>} : vector<2x64xbf16>, vector<64x256xbf16>, vector<2x256xf32> -> vector<2x256xf32>
    %174 = arith.addf %170, %173 : vector<2x256xf32>
    %175 = arith.negf %174 : vector<2x256xf32>
    %176 = math.exp %175 : vector<2x256xf32>
    %cst_63 = arith.constant 1.000000e+00 : f32
    %177 = vector.broadcast %cst_63 : f32 to vector<2x256xf32>
    %178 = arith.addf %177, %176 : vector<2x256xf32>
    %179 = arith.divf %177, %178 : vector<2x256xf32>
    %180 = vector.extract_strided_slice %179 {offsets = [0, 0], sizes = [2, 64], strides = [1, 1]} : vector<2x256xf32> to vector<2x64xf32>
    %181 = vector.extract_strided_slice %179 {offsets = [0, 64], sizes = [2, 64], strides = [1, 1]} : vector<2x256xf32> to vector<2x64xf32>
    %182 = vector.extract_strided_slice %179 {offsets = [0, 128], sizes = [2, 64], strides = [1, 1]} : vector<2x256xf32> to vector<2x64xf32>
    %183 = vector.extract_strided_slice %179 {offsets = [0, 192], sizes = [2, 64], strides = [1, 1]} : vector<2x256xf32> to vector<2x64xf32>
    %cst_64 = arith.constant 2.000000e+00 : f32
    %184 = vector.broadcast %cst_64 : f32 to vector<2x64xf32>
    %185 = arith.mulf %184, %183 : vector<2x64xf32>
    %cst_65 = arith.constant 1.000000e+00 : f32
    %186 = vector.broadcast %cst_65 : f32 to vector<2x64xf32>
    %187 = arith.subf %185, %186 : vector<2x64xf32>
    %188 = arith.mulf %181, %167 : vector<2x64xf32>
    %189 = arith.mulf %180, %187 : vector<2x64xf32>
    %190 = arith.addf %188, %189 : vector<2x64xf32>
    %191 = math.tanh %190 : vector<2x64xf32>
    %192 = arith.mulf %182, %191 : vector<2x64xf32>
    %cst_66 = arith.constant 0.000000e+00 : f32
    %193 = vector.broadcast %cst_66 : f32 to vector<2x64xf32>
    %194 = arith.cmpf ogt, %192, %193 : vector<2x64xf32>
    %cst_67 = arith.constant 0.00999999977 : f32
    %195 = vector.broadcast %cst_67 : f32 to vector<2x64xf32>
    %196 = arith.mulf %195, %192 : vector<2x64xf32>
    %197 = arith.select %194, %192, %196 : vector<2x64xi1>, vector<2x64xf32>
    %c0_68 = arith.constant 0 : index
    %c0_69 = arith.constant 0 : index
    %198 = vector.load %arg4[%c0_68, %c0_69] : memref<64x4xf32, #tpu.memory_space<vmem>>, vector<64x4xf32>
    %cst_70 = arith.constant dense<0.000000e+00> : vector<2x4xf32>
    %199 = tpu.matmul %197, %198, %cst_70 {dimension_numbers = #tpu.dot_dimension_numbers<[1], [0], [0], [1], [0, 0, 1, 1], [], []>} : vector<2x64xf32>, vector<64x4xf32>, vector<2x4xf32> -> vector<2x4xf32>
    %c0_71 = arith.constant 0 : index
    %c0_72 = arith.constant 0 : index
    %200 = vector.load %arg5[%c0_71, %c0_72] : memref<1x4xf32, #tpu.memory_space<vmem>>, vector<1x4xf32>
    %201 = vector.broadcast %200 : vector<1x4xf32> to vector<2x4xf32>
    %202 = arith.addf %199, %201 : vector<2x4xf32>
    %c0_73 = arith.constant 0 : index
    %c0_74 = arith.constant 0 : index
    %203 = vector.load %arg6[%c0_73, %c0_74] : memref<2x4xf32, #tpu.memory_space<vmem>>, vector<2x4xf32>
    tpu.vector_store %arg6[%c0_73, %c0_74], %202 {strides = array<i32>} : memref<2x4xf32, #tpu.memory_space<vmem>>, vector<2x4xf32>,
    return
  }
}

</mosaic_0001>

<llo_original>
// kernel: qnetwork_forward.1
$region0: #{qnetwork_forward.1}
  #allocation0 [shape = 'u32[]', space=smem, size = 0x4, offset = 0x4, fixed_abs, tag = 'smem constant byte address 0x4 - core index']
  #allocation1 [shape = 'u32[72,128]{1,0:T(1,128)}', space=vmem, size = 0x9000, scoped, tag = 'internal scratch']
  #allocation2 [shape = 'f32[16,256]{1,0:T(8,128)}', space=vmem, size = 0x4000, scoped, tag = 'scratch operand']
  %s0 = inlined_call_operand.vmem [shape: f32[16,16], index: 0, kind: input, shape index: {}]
  %s1 = inlined_call_operand.vmem [shape: f32[16,256], index: 1, kind: input, shape index: {}]
  %s2 = inlined_call_operand.vmem [shape: bf16[64,256], index: 2, kind: input, shape index: {}]
  %s3 = inlined_call_operand.vmem [shape: f32[1,256], index: 3, kind: input, shape index: {}]
  %s4 = inlined_call_operand.vmem [shape: f32[64,4], index: 4, kind: input, shape index: {}]
  %s5 = inlined_call_operand.vmem [shape: f32[1,4], index: 5, kind: input, shape index: {}]
  %s6 = inlined_call_operand.hbm [shape: f32[2,4], index: 6, kind: output, shape index: {}]
  %s7 = sld [smem:[#allocation0]]
  $region34: #{qnetwork_forward.1} parent=0
    _
  %s9 = ssub.s32 1, %s7
  %s10 = scalar_select 0, %s9, %s7
  $region1: #{qnetwork_forward.1} parent=0
    #allocation3 [shape = 'u8[1024]{0}', space=vmem, size = 0x400, scoped, tag = 'output window, operand 0, single buffered']
    #allocation4 [shape = 's32[1]{0}', space=sflag, size = 0x4, scoped, tag = 'scoped memory for qnetwork_forward.1']
    %11 = vsyncpa [#allocation4], 0
    // Predicated region
    $region2: #{qnetwork_forward.1} parent=1 // pred_check
      _
    $region3: #{qnetwork_forward.1} parent=1 // pred_check_branch
      %13 = sbr.rel (0) target = $region5
    $region4: #{qnetwork_forward.1} parent=1 // pred_region
      _
    $region5: #{qnetwork_forward.1} parent=1 // pred_fallthru
      _
    // Predicated region
    $region6: #{qnetwork_forward.1} parent=1 // pred_check
      _
    $region7: #{qnetwork_forward.1} parent=1 // pred_check_branch
      %15 = sbr.rel (0) target = $region9
    $region8: #{qnetwork_forward.1} parent=1 // pred_region
      _
    $region9: #{qnetwork_forward.1} parent=1 // pred_fallthru
      _
    // Predicated region
    $region10: #{qnetwork_forward.1} parent=1 // pred_check
      _
    $region11: #{qnetwork_forward.1} parent=1 // pred_check_branch
      %17 = sbr.rel (0) target = $region13
    $region12: #{qnetwork_forward.1} parent=1 // pred_region
      _
    $region13: #{qnetwork_forward.1} parent=1 // pred_fallthru
      _
    // Predicated region
    $region14: #{qnetwork_forward.1} parent=1 // pred_check
      _
    $region15: #{qnetwork_forward.1} parent=1 // pred_check_branch
      %19 = sbr.rel (0) target = $region17
    $region16: #{qnetwork_forward.1} parent=1 // pred_region
      _
    $region17: #{qnetwork_forward.1} parent=1 // pred_fallthru
      _
    // Predicated region
    $region18: #{qnetwork_forward.1} parent=1 // pred_check
      _
    $region19: #{qnetwork_forward.1} parent=1 // pred_check_branch
      %21 = sbr.rel (0) target = $region21
    $region20: #{qnetwork_forward.1} parent=1 // pred_region
      _
    $region21: #{qnetwork_forward.1} parent=1 // pred_fallthru
      _
    // Predicated region
    $region22: #{qnetwork_forward.1} parent=1 // pred_check
      _
    $region23: #{qnetwork_forward.1} parent=1 // pred_check_branch
      %23 = sbr.rel (0) target = $region25
    $region24: #{qnetwork_forward.1} parent=1 // pred_region
      _
    $region25: #{qnetwork_forward.1} parent=1 // pred_fallthru
      _
    %v25 = vld [vmem:[%s0] sm:$0xff]
    %v26 = vld [vmem:[%s0 + $0x8] sm:$0xff]
    %v27 = vld [vmem:[%s1] sm:$0xff]
    %v28 = vld [vmem:[%s1 + $0x8] sm:$0xff]
    %v29 = vld [vmem:[%s1 + $0x10] sm:$0xff]
    %v30 = vld [vmem:[%s1 + $0x18] sm:$0xff]
    %v31 = vld [vmem:[%s3] sm:$0x3]
    %v33 = vperm.slane %v31, 0
    %v34 = vperm.slane %v31, 1
    %vm37 = vcmask 130048
    %v39 = vsel %vm37, %v25, 0
    %v42 = vsel %vm37, %v26, 0
    %44 = vmatpush.msra.mxu0 0.0
    %45 = vmatpush.msra.mxu0 0.0
    %46 = vmatpush.msra.mxu0 0.0
    %47 = vmatpush.msra.mxu0 0.0
    %48 = vmatpush.msra.mxu0 0.0
    %49 = vmatpush.msra.mxu0 0.0
    %50 = vmatpush.msra.mxu0 0.0
    %51 = vmatpush.msra.mxu0 0.0
    %52 = vmatpush.msra.mxu0 0.0
    %53 = vmatpush.msra.mxu0 0.0
    %54 = vmatpush.msra.mxu0 0.0
    %55 = vmatpush.msra.mxu0 0.0
    %56 = vmatpush.msra.mxu0 0.0
    %57 = vmatpush.msra.mxu0 0.0
    %58 = vmatpush.msra.mxu0 %v29
    %59 = vmatpush.msra.mxu0 %v27
    %60 = vmatmul.f32.gmra.mxu0 %v39
    %v61 = vpop.f32.mrf.mxu0
    %v62 = vadd.f32 %v33, %v61
    %63 = vmatmul.f32.gmra.mxu0 %v42
    %v64 = vpop.f32.mrf.mxu0
    %v65 = vadd.f32 %v33, %v64
    %66 = vdwg.mxu0
    %67 = vmatpush.msra.mxu0 0.0
    %68 = vmatpush.msra.mxu0 0.0
    %69 = vmatpush.msra.mxu0 0.0
    %70 = vmatpush.msra.mxu0 0.0
    %71 = vmatpush.msra.mxu0 0.0
    %72 = vmatpush.msra.mxu0 0.0
    %73 = vmatpush.msra.mxu0 0.0
    %74 = vmatpush.msra.mxu0 0.0
    %75 = vmatpush.msra.mxu0 0.0
    %76 = vmatpush.msra.mxu0 0.0
    %77 = vmatpush.msra.mxu0 0.0
    %78 = vmatpush.msra.mxu0 0.0
    %79 = vmatpush.msra.mxu0 0.0
    %80 = vmatpush.msra.mxu0 0.0
    %81 = vmatpush.msra.mxu0 %v30
    %82 = vmatpush.msra.mxu0 %v28
    %83 = vmatmul.f32.gmra.mxu0 %v39
    %v84 = vpop.f32.mrf.mxu0
    %v85 = vadd.f32 %v34, %v84
    %86 = vmatmul.f32.gmra.mxu0 %v42
    %v87 = vpop.f32.mrf.mxu0
    %v88 = vadd.f32 %v34, %v87
    %89 = vdwg.mxu0
    %90 = vst [vmem:[#allocation2] sm:$0xff] %v62
    %91 = vst [vmem:[#allocation2 + $0x8] sm:$0xff] %v85
    %92 = vst [vmem:[#allocation2 + $0x10] sm:$0xff] %v65
    %93 = vst [vmem:[#allocation2 + $0x18] sm:$0xff] %v88
    %v94 = vld [vmem:[#allocation2] sm:$0x3]
    %v95 = vld [vmem:[#allocation2 + $0x8] sm:$0x3]
    %v96 = vld [vmem:[%s2] sm:$0xff]
    %v97 = vld [vmem:[%s2 + $0x8] sm:$0xff]
    %v98 = vld [vmem:[%s2 + $0x10] sm:$0xff]
    %v99 = vld [vmem:[%s2 + $0x18] sm:$0xff]
    %v100 = vld [vmem:[%s2 + $0x20] sm:$0xff]
    %v101 = vld [vmem:[%s2 + $0x28] sm:$0xff]
    %v102 = vld [vmem:[%s2 + $0x30] sm:$0xff]
    %v103 = vld [vmem:[%s2 + $0x38] sm:$0xff]
    %v112 = vunpack.c.l.b16 %v96
    %v113 = vunpack.c.h.b16 %v96
    %v114 = vunpack.c.l.b16 %v97
    %v115 = vunpack.c.h.b16 %v97
    %v116 = vunpack.c.l.b16 %v98
    %v117 = vunpack.c.h.b16 %v98
    %v118 = vunpack.c.l.b16 %v99
    %v119 = vunpack.c.h.b16 %v99
    %v120 = vunpack.c.l.b16 %v100
    %v121 = vunpack.c.h.b16 %v100
    %v122 = vunpack.c.l.b16 %v101
    %v123 = vunpack.c.h.b16 %v101
    %v124 = vunpack.c.l.b16 %v102
    %v125 = vunpack.c.h.b16 %v102
    %v126 = vunpack.c.l.b16 %v103
    %v127 = vunpack.c.h.b16 %v103
    %v128 = vpack.c.b16 %v114, %v112
    %v129 = vpack.c.b16 %v115, %v113
    %v130 = vpack.c.b16 %v118, %v116
    %v131 = vpack.c.b16 %v119, %v117
    %v132 = vpack.c.b16 %v122, %v120
    %v133 = vpack.c.b16 %v123, %v121
    %v134 = vpack.c.b16 %v126, %v124
    %v135 = vpack.c.b16 %v127, %v125
    %vm144 = vcmask 523264
    %v146 = vsel %vm144, 0, 0
    %148 = vmatpush.bf16.msra.mxu0 0
    %149 = vmatpush.bf16.msra.mxu0 0
    %150 = vmatpush.bf16.msra.mxu0 0
    %151 = vmatpush.bf16.msra.mxu0 0
    %152 = vmatpush.bf16.msra.mxu0 %v134
    %153 = vmatpush.bf16.msra.mxu0 %v132
    %154 = vmatpush.bf16.msra.mxu0 %v130
    %155 = vmatpush.bf16.msra.mxu0 %v128
    %156 = vmatmul.bf16.gmra.mxu0 %v146
    %v157 = vpop.f32.mrf.mxu0
    %v158 = vadd.f32 0.0, %v157
    %v159 = vpop.f32.mrf.mxu0
    %160 = vdwg.mxu0
    %161 = vmatpush.bf16.msra.mxu0 0
    %162 = vmatpush.bf16.msra.mxu0 0
    %163 = vmatpush.bf16.msra.mxu0 0
    %164 = vmatpush.bf16.msra.mxu0 0
    %165 = vmatpush.bf16.msra.mxu0 %v135
    %166 = vmatpush.bf16.msra.mxu0 %v133
    %167 = vmatpush.bf16.msra.mxu0 %v131
    %168 = vmatpush.bf16.msra.mxu0 %v129
    %169 = vmatmul.bf16.gmra.mxu0 %v146
    %v170 = vpop.f32.mrf.mxu0
    %v171 = vadd.f32 0.0, %v170
    %v172 = vpop.f32.mrf.mxu0
    %173 = vdwg.mxu0
    %v174 = vadd.f32 %v94, %v158
    %v175 = vadd.f32 %v95, %v171
    %v176 = vxor.u32 %v174, 2147483648
    %v177 = vxor.u32 %v175, 2147483648
    %v178 = vmul.f32 %v176, 1.442695
    %v179 = vpow.pop %v178
    %v180 = vmul.f32 %v177, 1.442695
    %v181 = vpow.pop %v180
    %v182 = vadd.f32 %v179, 1.0
    %v183 = vadd.f32 %v181, 1.0
    %v184 = vrcp.pop %v182
    %v185 = vmul.f32 %v182, %v184
    %v186 = vsub.f32 1.0, %v185
    %v187 = vmul.f32 %v184, %v186
    %v188 = vadd.f32 %v184, %v187
    %vm189 = vweird.f32 %v182
    %vm190 = vweird.f32 %v184
    %vm191 = vmor %vm189, %vm190
    %v192 = vsel %vm191, %v184, %v188
    %v193 = vand.u32 2147483647, %v182
    %vm194 = vcmp.eq.f32.partialorder %v193, 8.507059e+37
    %v195 = vand.u32 %v182, 2147483648
    %v196 = vor.u32 1.1754944e-38, %v195
    %v197 = vsel %vm194, %v196, %v192
    %v198 = vmul.f32 1.0, %v197
    %v199 = vrcp.pop %v183
    %v200 = vmul.f32 %v183, %v199
    %v201 = vsub.f32 1.0, %v200
    %v202 = vmul.f32 %v199, %v201
    %v203 = vadd.f32 %v199, %v202
    %vm204 = vweird.f32 %v183
    %vm205 = vweird.f32 %v199
    %vm206 = vmor %vm204, %vm205
    %v207 = vsel %vm206, %v199, %v203
    %v208 = vand.u32 2147483647, %v183
    %vm209 = vcmp.eq.f32.partialorder %v208, 8.507059e+37
    %v210 = vand.u32 %v183, 2147483648
    %v211 = vor.u32 1.1754944e-38, %v210
    %v212 = vsel %vm209, %v211, %v207
    %v213 = vmul.f32 1.0, %v212
    %v214 = vmul.f32 %v213, 2.0
    %v215 = vsub.f32 %v214, 1.0
    %v216 = vmul.f32 %v198, 0.0
    %218 = vrot.lane.b32.xlu0 %v215, 64
    %v219 = vpop.permute.xlu0 %218
    %v221 = vmul.f32 %v198, %v219
    %223 = vrot.lane.b32.xlu0 %v221, 64
    %v224 = vpop.permute.xlu0 %223
    %v226 = vadd.f32 %v216, %v224
    %v227 = vtanh.pop %v226
    %229 = vrot.lane.b32.xlu0 %v227, 64
    %v230 = vpop.permute.xlu0 %229
    %v232 = vmul.f32 %v213, %v230
    %v233 = vld [vmem:[#allocation2] sm:$0xc]
    %v234 = vld [vmem:[#allocation2 + $0x8] sm:$0xc]
    %v235 = vpack.c.bf16 %v232, %v232
    %v237 = vsel %vm144, %v235, 0
    %239 = vmatpush.bf16.msra.mxu0 0
    %240 = vmatpush.bf16.msra.mxu0 0
    %241 = vmatpush.bf16.msra.mxu0 0
    %242 = vmatpush.bf16.msra.mxu0 0
    %243 = vmatpush.bf16.msra.mxu0 %v134
    %244 = vmatpush.bf16.msra.mxu0 %v132
    %245 = vmatpush.bf16.msra.mxu0 %v130
    %246 = vmatpush.bf16.msra.mxu0 %v128
    %247 = vmatmul.bf16.gmra.mxu0 %v237
    %v248 = vpop.f32.mrf.mxu0
    %v249 = vadd.f32 0.0, %v248
    %v250 = vpop.f32.mrf.mxu0
    %251 = vdwg.mxu0
    %252 = vmatpush.bf16.msra.mxu0 0
    %253 = vmatpush.bf16.msra.mxu0 0
    %254 = vmatpush.bf16.msra.mxu0 0
    %255 = vmatpush.bf16.msra.mxu0 0
    %256 = vmatpush.bf16.msra.mxu0 %v135
    %257 = vmatpush.bf16.msra.mxu0 %v133
    %258 = vmatpush.bf16.msra.mxu0 %v131
    %259 = vmatpush.bf16.msra.mxu0 %v129
    %260 = vmatmul.bf16.gmra.mxu0 %v237
    %v261 = vpop.f32.mrf.mxu0
    %v262 = vadd.f32 0.0, %v261
    %v263 = vpop.f32.mrf.mxu0
    %264 = vdwg.mxu0
    %v267 = vrot.slane %v249, 6
    %v268 = vrot.slane %v262, 6
    %v271 = vadd.f32 %v233, %v267
    %v272 = vadd.f32 %v234, %v268
    %v273 = vxor.u32 %v271, 2147483648
    %v274 = vxor.u32 %v272, 2147483648
    %v275 = vmul.f32 %v273, 1.442695
    %v276 = vpow.pop %v275
    %v277 = vmul.f32 %v274, 1.442695
    %v278 = vpow.pop %v277
    %v279 = vadd.f32 %v276, 1.0
    %v280 = vadd.f32 %v278, 1.0
    %v281 = vrcp.pop %v279
    %v282 = vmul.f32 %v279, %v281
    %v283 = vsub.f32 1.0, %v282
    %v284 = vmul.f32 %v281, %v283
    %v285 = vadd.f32 %v281, %v284
    %vm286 = vweird.f32 %v279
    %vm287 = vweird.f32 %v281
    %vm288 = vmor %vm286, %vm287
    %v289 = vsel %vm288, %v281, %v285
    %v290 = vand.u32 2147483647, %v279
    %vm291 = vcmp.eq.f32.partialorder %v290, 8.507059e+37
    %v292 = vand.u32 %v279, 2147483648
    %v293 = vor.u32 1.1754944e-38, %v292
    %v294 = vsel %vm291, %v293, %v289
    %v295 = vmul.f32 1.0, %v294
    %v296 = vrcp.pop %v280
    %v297 = vmul.f32 %v280, %v296
    %v298 = vsub.f32 1.0, %v297
    %v299 = vmul.f32 %v296, %v298
    %v300 = vadd.f32 %v296, %v299
    %vm301 = vweird.f32 %v280
    %vm302 = vweird.f32 %v296
    %vm303 = vmor %vm301, %vm302
    %v304 = vsel %vm303, %v296, %v300
    %v305 = vand.u32 2147483647, %v280
    %vm306 = vcmp.eq.f32.partialorder %v305, 8.507059e+37
    %v307 = vand.u32 %v280, 2147483648
    %v308 = vor.u32 1.1754944e-38, %v307
    %v309 = vsel %vm306, %v308, %v304
    %v310 = vmul.f32 1.0, %v309
    %v311 = vmul.f32 %v310, 2.0
    %v312 = vsub.f32 %v311, 1.0
    %v314 = vrot.slane %v226, 6
    %v316 = vmul.f32 %v295, %v314
    %318 = vrot.lane.b32.xlu0 %v312, 64
    %v319 = vpop.permute.xlu0 %318
    %v321 = vmul.f32 %v295, %v319
    %323 = vrot.lane.b32.xlu0 %v321, 64
    %v324 = vpop.permute.xlu0 %323
    %v326 = vadd.f32 %v316, %v324
    %v327 = vtanh.pop %v326
    %329 = vrot.lane.b32.xlu0 %v327, 64
    %v330 = vpop.permute.xlu0 %329
    %v332 = vmul.f32 %v310, %v330
    %v333 = vld [vmem:[#allocation2] sm:$0x30]
    %v334 = vld [vmem:[#allocation2 + $0x8] sm:$0x30]
    %v335 = vpack.c.bf16 %v332, %v332
    %v337 = vrot.slane %v335, 1
    %v339 = vsel %vm144, %v337, 0
    %341 = vmatpush.bf16.msra.mxu0 0
    %342 = vmatpush.bf16.msra.mxu0 0
    %343 = vmatpush.bf16.msra.mxu0 0
    %344 = vmatpush.bf16.msra.mxu0 0
    %345 = vmatpush.bf16.msra.mxu0 %v134
    %346 = vmatpush.bf16.msra.mxu0 %v132
    %347 = vmatpush.bf16.msra.mxu0 %v130
    %348 = vmatpush.bf16.msra.mxu0 %v128
    %349 = vmatmul.bf16.gmra.mxu0 %v339
    %v350 = vpop.f32.mrf.mxu0
    %v351 = vadd.f32 0.0, %v350
    %v352 = vpop.f32.mrf.mxu0
    %353 = vdwg.mxu0
    %354 = vmatpush.bf16.msra.mxu0 0
    %355 = vmatpush.bf16.msra.mxu0 0
    %356 = vmatpush.bf16.msra.mxu0 0
    %357 = vmatpush.bf16.msra.mxu0 0
    %358 = vmatpush.bf16.msra.mxu0 %v135
    %359 = vmatpush.bf16.msra.mxu0 %v133
    %360 = vmatpush.bf16.msra.mxu0 %v131
    %361 = vmatpush.bf16.msra.mxu0 %v129
    %362 = vmatmul.bf16.gmra.mxu0 %v339
    %v363 = vpop.f32.mrf.mxu0
    %v364 = vadd.f32 0.0, %v363
    %v365 = vpop.f32.mrf.mxu0
    %366 = vdwg.mxu0
    %v369 = vrot.slane %v351, 4
    %v370 = vrot.slane %v364, 4
    %v373 = vadd.f32 %v333, %v369
    %v374 = vadd.f32 %v334, %v370
    %v375 = vxor.u32 %v373, 2147483648
    %v376 = vxor.u32 %v374, 2147483648
    %v377 = vmul.f32 %v375, 1.442695
    %v378 = vpow.pop %v377
    %v379 = vmul.f32 %v376, 1.442695
    %v380 = vpow.pop %v379
    %v381 = vadd.f32 %v378, 1.0
    %v382 = vadd.f32 %v380, 1.0
    %v383 = vrcp.pop %v381
    %v384 = vmul.f32 %v381, %v383
    %v385 = vsub.f32 1.0, %v384
    %v386 = vmul.f32 %v383, %v385
    %v387 = vadd.f32 %v383, %v386
    %vm388 = vweird.f32 %v381
    %vm389 = vweird.f32 %v383
    %vm390 = vmor %vm388, %vm389
    %v391 = vsel %vm390, %v383, %v387
    %v392 = vand.u32 2147483647, %v381
    %vm393 = vcmp.eq.f32.partialorder %v392, 8.507059e+37
    %v394 = vand.u32 %v381, 2147483648
    %v395 = vor.u32 1.1754944e-38, %v394
    %v396 = vsel %vm393, %v395, %v391
    %v397 = vmul.f32 1.0, %v396
    %v398 = vrcp.pop %v382
    %v399 = vmul.f32 %v382, %v398
    %v400 = vsub.f32 1.0, %v399
    %v401 = vmul.f32 %v398, %v400
    %v402 = vadd.f32 %v398, %v401
    %vm403 = vweird.f32 %v382
    %vm404 = vweird.f32 %v398
    %vm405 = vmor %vm403, %vm404
    %v406 = vsel %vm405, %v398, %v402
    %v407 = vand.u32 2147483647, %v382
    %vm408 = vcmp.eq.f32.partialorder %v407, 8.507059e+37
    %v409 = vand.u32 %v382, 2147483648
    %v410 = vor.u32 1.1754944e-38, %v409
    %v411 = vsel %vm408, %v410, %v406
    %v412 = vmul.f32 1.0, %v411
    %v413 = vmul.f32 %v412, 2.0
    %v414 = vsub.f32 %v413, 1.0
    %v416 = vrot.slane %v326, 6
    %v418 = vmul.f32 %v397, %v416
    %420 = vrot.lane.b32.xlu0 %v414, 64
    %v421 = vpop.permute.xlu0 %420
    %v423 = vmul.f32 %v397, %v421
    %425 = vrot.lane.b32.xlu0 %v423, 64
    %v426 = vpop.permute.xlu0 %425
    %v428 = vadd.f32 %v418, %v426
    %v429 = vtanh.pop %v428
    %431 = vrot.lane.b32.xlu0 %v429, 64
    %v432 = vpop.permute.xlu0 %431
    %v434 = vmul.f32 %v412, %v432
    %v435 = vld [vmem:[#allocation2] sm:$0xc0]
    %v436 = vld [vmem:[#allocation2 + $0x8] sm:$0xc0]
    %v437 = vpack.c.bf16 %v434, %v434
    %v439 = vrot.slane %v437, 2
    %v441 = vsel %vm144, %v439, 0
    %443 = vmatpush.bf16.msra.mxu0 0
    %444 = vmatpush.bf16.msra.mxu0 0
    %445 = vmatpush.bf16.msra.mxu0 0
    %446 = vmatpush.bf16.msra.mxu0 0
    %447 = vmatpush.bf16.msra.mxu0 %v134
    %448 = vmatpush.bf16.msra.mxu0 %v132
    %449 = vmatpush.bf16.msra.mxu0 %v130
    %450 = vmatpush.bf16.msra.mxu0 %v128
    %451 = vmatmul.bf16.gmra.mxu0 %v441
    %v452 = vpop.f32.mrf.mxu0
    %v453 = vadd.f32 0.0, %v452
    %v454 = vpop.f32.mrf.mxu0
    %455 = vdwg.mxu0
    %456 = vmatpush.bf16.msra.mxu0 0
    %457 = vmatpush.bf16.msra.mxu0 0
    %458 = vmatpush.bf16.msra.mxu0 0
    %459 = vmatpush.bf16.msra.mxu0 0
    %460 = vmatpush.bf16.msra.mxu0 %v135
    %461 = vmatpush.bf16.msra.mxu0 %v133
    %462 = vmatpush.bf16.msra.mxu0 %v131
    %463 = vmatpush.bf16.msra.mxu0 %v129
    %464 = vmatmul.bf16.gmra.mxu0 %v441
    %v465 = vpop.f32.mrf.mxu0
    %v466 = vadd.f32 0.0, %v465
    %v467 = vpop.f32.mrf.mxu0
    %468 = vdwg.mxu0
    %v471 = vrot.slane %v453, 2
    %v472 = vrot.slane %v466, 2
    %v475 = vadd.f32 %v435, %v471
    %v476 = vadd.f32 %v436, %v472
    %v477 = vxor.u32 %v475, 2147483648
    %v478 = vxor.u32 %v476, 2147483648
    %v479 = vmul.f32 %v477, 1.442695
    %v480 = vpow.pop %v479
    %v481 = vmul.f32 %v478, 1.442695
    %v482 = vpow.pop %v481
    %v483 = vadd.f32 %v480, 1.0
    %v484 = vadd.f32 %v482, 1.0
    %v485 = vrcp.pop %v483
    %v486 = vmul.f32 %v483, %v485
    %v487 = vsub.f32 1.0, %v486
    %v488 = vmul.f32 %v485, %v487
    %v489 = vadd.f32 %v485, %v488
    %vm490 = vweird.f32 %v483
    %vm491 = vweird.f32 %v485
    %vm492 = vmor %vm490, %vm491
    %v493 = vsel %vm492, %v485, %v489
    %v494 = vand.u32 2147483647, %v483
    %vm495 = vcmp.eq.f32.partialorder %v494, 8.507059e+37
    %v496 = vand.u32 %v483, 2147483648
    %v497 = vor.u32 1.1754944e-38, %v496
    %v498 = vsel %vm495, %v497, %v493
    %v499 = vmul.f32 1.0, %v498
    %v500 = vrcp.pop %v484
    %v501 = vmul.f32 %v484, %v500
    %v502 = vsub.f32 1.0, %v501
    %v503 = vmul.f32 %v500, %v502
    %v504 = vadd.f32 %v500, %v503
    %vm505 = vweird.f32 %v484
    %vm506 = vweird.f32 %v500
    %vm507 = vmor %vm505, %vm506
    %v508 = vsel %vm507, %v500, %v504
    %v509 = vand.u32 2147483647, %v484
    %vm510 = vcmp.eq.f32.partialorder %v509, 8.507059e+37
    %v511 = vand.u32 %v484, 2147483648
    %v512 = vor.u32 1.1754944e-38, %v511
    %v513 = vsel %vm510, %v512, %v508
    %v514 = vmul.f32 1.0, %v513
    %v515 = vmul.f32 %v514, 2.0
    %v516 = vsub.f32 %v515, 1.0
    %v518 = vrot.slane %v428, 6
    %v520 = vmul.f32 %v499, %v518
    %522 = vrot.lane.b32.xlu0 %v516, 64
    %v523 = vpop.permute.xlu0 %522
    %v525 = vmul.f32 %v499, %v523
    %527 = vrot.lane.b32.xlu0 %v525, 64
    %v528 = vpop.permute.xlu0 %527
    %v530 = vadd.f32 %v520, %v528
    %v531 = vtanh.pop %v530
    %533 = vrot.lane.b32.xlu0 %v531, 64
    %v534 = vpop.permute.xlu0 %533
    %v536 = vmul.f32 %v514, %v534
    %v537 = vld [vmem:[#allocation2 + $0x10] sm:$0x3]
    %v538 = vld [vmem:[#allocation2 + $0x18] sm:$0x3]
    %v539 = vpack.c.bf16 %v536, %v536
    %v541 = vrot.slane %v539, 3
    %v543 = vsel %vm144, %v541, 0
    %545 = vmatpush.bf16.msra.mxu0 0
    %546 = vmatpush.bf16.msra.mxu0 0
    %547 = vmatpush.bf16.msra.mxu0 0
    %548 = vmatpush.bf16.msra.mxu0 0
    %549 = vmatpush.bf16.msra.mxu0 %v134
    %550 = vmatpush.bf16.msra.mxu0 %v132
    %551 = vmatpush.bf16.msra.mxu0 %v130
    %552 = vmatpush.bf16.msra.mxu0 %v128
    %553 = vmatmul.bf16.gmra.mxu0 %v543
    %v554 = vpop.f32.mrf.mxu0
    %v555 = vadd.f32 0.0, %v554
    %v556 = vpop.f32.mrf.mxu0
    %557 = vdwg.mxu0
    %558 = vmatpush.bf16.msra.mxu0 0
    %559 = vmatpush.bf16.msra.mxu0 0
    %560 = vmatpush.bf16.msra.mxu0 0
    %561 = vmatpush.bf16.msra.mxu0 0
    %562 = vmatpush.bf16.msra.mxu0 %v135
    %563 = vmatpush.bf16.msra.mxu0 %v133
    %564 = vmatpush.bf16.msra.mxu0 %v131
    %565 = vmatpush.bf16.msra.mxu0 %v129
    %566 = vmatmul.bf16.gmra.mxu0 %v543
    %v567 = vpop.f32.mrf.mxu0
    %v568 = vadd.f32 0.0, %v567
    %v569 = vpop.f32.mrf.mxu0
    %570 = vdwg.mxu0
    %v571 = vadd.f32 %v537, %v555
    %v572 = vadd.f32 %v538, %v568
    %v573 = vxor.u32 %v571, 2147483648
    %v574 = vxor.u32 %v572, 2147483648
    %v575 = vmul.f32 %v573, 1.442695
    %v576 = vpow.pop %v575
    %v577 = vmul.f32 %v574, 1.442695
    %v578 = vpow.pop %v577
    %v579 = vadd.f32 %v576, 1.0
    %v580 = vadd.f32 %v578, 1.0
    %v581 = vrcp.pop %v579
    %v582 = vmul.f32 %v579, %v581
    %v583 = vsub.f32 1.0, %v582
    %v584 = vmul.f32 %v581, %v583
    %v585 = vadd.f32 %v581, %v584
    %vm586 = vweird.f32 %v579
    %vm587 = vweird.f32 %v581
    %vm588 = vmor %vm586, %vm587
    %v589 = vsel %vm588, %v581, %v585
    %v590 = vand.u32 2147483647, %v579
    %vm591 = vcmp.eq.f32.partialorder %v590, 8.507059e+37
    %v592 = vand.u32 %v579, 2147483648
    %v593 = vor.u32 1.1754944e-38, %v592
    %v594 = vsel %vm591, %v593, %v589
    %v595 = vmul.f32 1.0, %v594
    %v596 = vrcp.pop %v580
    %v597 = vmul.f32 %v580, %v596
    %v598 = vsub.f32 1.0, %v597
    %v599 = vmul.f32 %v596, %v598
    %v600 = vadd.f32 %v596, %v599
    %vm601 = vweird.f32 %v580
    %vm602 = vweird.f32 %v596
    %vm603 = vmor %vm601, %vm602
    %v604 = vsel %vm603, %v596, %v600
    %v605 = vand.u32 2147483647, %v580
    %vm606 = vcmp.eq.f32.partialorder %v605, 8.507059e+37
    %v607 = vand.u32 %v580, 2147483648
    %v608 = vor.u32 1.1754944e-38, %v607
    %v609 = vsel %vm606, %v608, %v604
    %v610 = vmul.f32 1.0, %v609
    %v611 = vmul.f32 %v610, 2.0
    %v612 = vsub.f32 %v611, 1.0
    %v614 = vrot.slane %v530, 6
    %v616 = vmul.f32 %v595, %v614
    %618 = vrot.lane.b32.xlu0 %v612, 64
    %v619 = vpop.permute.xlu0 %618
    %v621 = vmul.f32 %v595, %v619
    %623 = vrot.lane.b32.xlu0 %v621, 64
    %v624 = vpop.permute.xlu0 %623
    %v626 = vadd.f32 %v616, %v624
    %v627 = vtanh.pop %v626
    %629 = vrot.lane.b32.xlu0 %v627, 64
    %v630 = vpop.permute.xlu0 %629
    %v632 = vmul.f32 %v610, %v630
    %v633 = vld [vmem:[#allocation2 + $0x10] sm:$0xc]
    %v634 = vld [vmem:[#allocation2 + $0x18] sm:$0xc]
    %v635 = vpack.c.bf16 %v632, %v632
    %v637 = vsel %vm144, %v635, 0
    %639 = vmatpush.bf16.msra.mxu0 0
    %640 = vmatpush.bf16.msra.mxu0 0
    %641 = vmatpush.bf16.msra.mxu0 0
    %642 = vmatpush.bf16.msra.mxu0 0
    %643 = vmatpush.bf16.msra.mxu0 %v134
    %644 = vmatpush.bf16.msra.mxu0 %v132
    %645 = vmatpush.bf16.msra.mxu0 %v130
    %646 = vmatpush.bf16.msra.mxu0 %v128
    %647 = vmatmul.bf16.gmra.mxu0 %v637
    %v648 = vpop.f32.mrf.mxu0
    %v649 = vadd.f32 0.0, %v648
    %v650 = vpop.f32.mrf.mxu0
    %651 = vdwg.mxu0
    %652 = vmatpush.bf16.msra.mxu0 0
    %653 = vmatpush.bf16.msra.mxu0 0
    %654 = vmatpush.bf16.msra.mxu0 0
    %655 = vmatpush.bf16.msra.mxu0 0
    %656 = vmatpush.bf16.msra.mxu0 %v135
    %657 = vmatpush.bf16.msra.mxu0 %v133
    %658 = vmatpush.bf16.msra.mxu0 %v131
    %659 = vmatpush.bf16.msra.mxu0 %v129
    %660 = vmatmul.bf16.gmra.mxu0 %v637
    %v661 = vpop.f32.mrf.mxu0
    %v662 = vadd.f32 0.0, %v661
    %v663 = vpop.f32.mrf.mxu0
    %664 = vdwg.mxu0
    %v667 = vrot.slane %v649, 6
    %v668 = vrot.slane %v662, 6
    %v671 = vadd.f32 %v633, %v667
    %v672 = vadd.f32 %v634, %v668
    %v673 = vxor.u32 %v671, 2147483648
    %v674 = vxor.u32 %v672, 2147483648
    %v675 = vmul.f32 %v673, 1.442695
    %v676 = vpow.pop %v675
    %v677 = vmul.f32 %v674, 1.442695
    %v678 = vpow.pop %v677
    %v679 = vadd.f32 %v676, 1.0
    %v680 = vadd.f32 %v678, 1.0
    %v681 = vrcp.pop %v679
    %v682 = vmul.f32 %v679, %v681
    %v683 = vsub.f32 1.0, %v682
    %v684 = vmul.f32 %v681, %v683
    %v685 = vadd.f32 %v681, %v684
    %vm686 = vweird.f32 %v679
    %vm687 = vweird.f32 %v681
    %vm688 = vmor %vm686, %vm687
    %v689 = vsel %vm688, %v681, %v685
    %v690 = vand.u32 2147483647, %v679
    %vm691 = vcmp.eq.f32.partialorder %v690, 8.507059e+37
    %v692 = vand.u32 %v679, 2147483648
    %v693 = vor.u32 1.1754944e-38, %v692
    %v694 = vsel %vm691, %v693, %v689
    %v695 = vmul.f32 1.0, %v694
    %v696 = vrcp.pop %v680
    %v697 = vmul.f32 %v680, %v696
    %v698 = vsub.f32 1.0, %v697
    %v699 = vmul.f32 %v696, %v698
    %v700 = vadd.f32 %v696, %v699
    %vm701 = vweird.f32 %v680
    %vm702 = vweird.f32 %v696
    %vm703 = vmor %vm701, %vm702
    %v704 = vsel %vm703, %v696, %v700
    %v705 = vand.u32 2147483647, %v680
    %vm706 = vcmp.eq.f32.partialorder %v705, 8.507059e+37
    %v707 = vand.u32 %v680, 2147483648
    %v708 = vor.u32 1.1754944e-38, %v707
    %v709 = vsel %vm706, %v708, %v704
    %v710 = vmul.f32 1.0, %v709
    %v711 = vmul.f32 %v710, 2.0
    %v712 = vsub.f32 %v711, 1.0
    %v714 = vrot.slane %v626, 6
    %v716 = vmul.f32 %v695, %v714
    %718 = vrot.lane.b32.xlu0 %v712, 64
    %v719 = vpop.permute.xlu0 %718
    %v721 = vmul.f32 %v695, %v719
    %723 = vrot.lane.b32.xlu0 %v721, 64
    %v724 = vpop.permute.xlu0 %723
    %v726 = vadd.f32 %v716, %v724
    %v727 = vtanh.pop %v726
    %729 = vrot.lane.b32.xlu0 %v727, 64
    %v730 = vpop.permute.xlu0 %729
    %v732 = vmul.f32 %v710, %v730
    %v733 = vld [vmem:[#allocation2 + $0x10] sm:$0x30]
    %v734 = vld [vmem:[#allocation2 + $0x18] sm:$0x30]
    %v735 = vpack.c.bf16 %v732, %v732
    %v737 = vrot.slane %v735, 1
    %v739 = vsel %vm144, %v737, 0
    %741 = vmatpush.bf16.msra.mxu0 0
    %742 = vmatpush.bf16.msra.mxu0 0
    %743 = vmatpush.bf16.msra.mxu0 0
    %744 = vmatpush.bf16.msra.mxu0 0
    %745 = vmatpush.bf16.msra.mxu0 %v134
    %746 = vmatpush.bf16.msra.mxu0 %v132
    %747 = vmatpush.bf16.msra.mxu0 %v130
    %748 = vmatpush.bf16.msra.mxu0 %v128
    %749 = vmatmul.bf16.gmra.mxu0 %v739
    %v750 = vpop.f32.mrf.mxu0
    %v751 = vadd.f32 0.0, %v750
    %v752 = vpop.f32.mrf.mxu0
    %753 = vdwg.mxu0
    %754 = vmatpush.bf16.msra.mxu0 0
    %755 = vmatpush.bf16.msra.mxu0 0
    %756 = vmatpush.bf16.msra.mxu0 0
    %757 = vmatpush.bf16.msra.mxu0 0
    %758 = vmatpush.bf16.msra.mxu0 %v135
    %759 = vmatpush.bf16.msra.mxu0 %v133
    %760 = vmatpush.bf16.msra.mxu0 %v131
    %761 = vmatpush.bf16.msra.mxu0 %v129
    %762 = vmatmul.bf16.gmra.mxu0 %v739
    %v763 = vpop.f32.mrf.mxu0
    %v764 = vadd.f32 0.0, %v763
    %v765 = vpop.f32.mrf.mxu0
    %766 = vdwg.mxu0
    %v769 = vrot.slane %v751, 4
    %v770 = vrot.slane %v764, 4
    %v773 = vadd.f32 %v733, %v769
    %v774 = vadd.f32 %v734, %v770
    %v775 = vxor.u32 %v773, 2147483648
    %v776 = vxor.u32 %v774, 2147483648
    %v777 = vmul.f32 %v775, 1.442695
    %v778 = vpow.pop %v777
    %v779 = vmul.f32 %v776, 1.442695
    %v780 = vpow.pop %v779
    %v781 = vadd.f32 %v778, 1.0
    %v782 = vadd.f32 %v780, 1.0
    %v783 = vrcp.pop %v781
    %v784 = vmul.f32 %v781, %v783
    %v785 = vsub.f32 1.0, %v784
    %v786 = vmul.f32 %v783, %v785
    %v787 = vadd.f32 %v783, %v786
    %vm788 = vweird.f32 %v781
    %vm789 = vweird.f32 %v783
    %vm790 = vmor %vm788, %vm789
    %v791 = vsel %vm790, %v783, %v787
    %v792 = vand.u32 2147483647, %v781
    %vm793 = vcmp.eq.f32.partialorder %v792, 8.507059e+37
    %v794 = vand.u32 %v781, 2147483648
    %v795 = vor.u32 1.1754944e-38, %v794
    %v796 = vsel %vm793, %v795, %v791
    %v797 = vmul.f32 1.0, %v796
    %v798 = vrcp.pop %v782
    %v799 = vmul.f32 %v782, %v798
    %v800 = vsub.f32 1.0, %v799
    %v801 = vmul.f32 %v798, %v800
    %v802 = vadd.f32 %v798, %v801
    %vm803 = vweird.f32 %v782
    %vm804 = vweird.f32 %v798
    %vm805 = vmor %vm803, %vm804
    %v806 = vsel %vm805, %v798, %v802
    %v807 = vand.u32 2147483647, %v782
    %vm808 = vcmp.eq.f32.partialorder %v807, 8.507059e+37
    %v809 = vand.u32 %v782, 2147483648
    %v810 = vor.u32 1.1754944e-38, %v809
    %v811 = vsel %vm808, %v810, %v806
    %v812 = vmul.f32 1.0, %v811
    %v813 = vmul.f32 %v812, 2.0
    %v814 = vsub.f32 %v813, 1.0
    %v816 = vrot.slane %v726, 6
    %v818 = vmul.f32 %v797, %v816
    %820 = vrot.lane.b32.xlu0 %v814, 64
    %v821 = vpop.permute.xlu0 %820
    %v823 = vmul.f32 %v797, %v821
    %825 = vrot.lane.b32.xlu0 %v823, 64
    %v826 = vpop.permute.xlu0 %825
    %v828 = vadd.f32 %v818, %v826
    %v829 = vtanh.pop %v828
    %831 = vrot.lane.b32.xlu0 %v829, 64
    %v832 = vpop.permute.xlu0 %831
    %v834 = vmul.f32 %v812, %v832
    %v835 = vld [vmem:[#allocation2 + $0x10] sm:$0xc0]
    %v836 = vld [vmem:[#allocation2 + $0x18] sm:$0xc0]
    %v837 = vpack.c.bf16 %v834, %v834
    %v839 = vrot.slane %v837, 2
    %v841 = vsel %vm144, %v839, 0
    %843 = vmatpush.bf16.msra.mxu0 0
    %844 = vmatpush.bf16.msra.mxu0 0
    %845 = vmatpush.bf16.msra.mxu0 0
    %846 = vmatpush.bf16.msra.mxu0 0
    %847 = vmatpush.bf16.msra.mxu0 %v134
    %848 = vmatpush.bf16.msra.mxu0 %v132
    %849 = vmatpush.bf16.msra.mxu0 %v130
    %850 = vmatpush.bf16.msra.mxu0 %v128
    %851 = vmatmul.bf16.gmra.mxu0 %v841
    %v852 = vpop.f32.mrf.mxu0
    %v853 = vadd.f32 0.0, %v852
    %v854 = vpop.f32.mrf.mxu0
    %855 = vdwg.mxu0
    %856 = vmatpush.bf16.msra.mxu0 0
    %857 = vmatpush.bf16.msra.mxu0 0
    %858 = vmatpush.bf16.msra.mxu0 0
    %859 = vmatpush.bf16.msra.mxu0 0
    %860 = vmatpush.bf16.msra.mxu0 %v135
    %861 = vmatpush.bf16.msra.mxu0 %v133
    %862 = vmatpush.bf16.msra.mxu0 %v131
    %863 = vmatpush.bf16.msra.mxu0 %v129
    %864 = vmatmul.bf16.gmra.mxu0 %v841
    %v865 = vpop.f32.mrf.mxu0
    %v866 = vadd.f32 0.0, %v865
    %v867 = vpop.f32.mrf.mxu0
    %868 = vdwg.mxu0
    %v871 = vrot.slane %v853, 2
    %v872 = vrot.slane %v866, 2
    %v875 = vadd.f32 %v835, %v871
    %v876 = vadd.f32 %v836, %v872
    %v877 = vxor.u32 %v875, 2147483648
    %v878 = vxor.u32 %v876, 2147483648
    %v879 = vmul.f32 %v877, 1.442695
    %v880 = vpow.pop %v879
    %v881 = vmul.f32 %v878, 1.442695
    %v882 = vpow.pop %v881
    %v883 = vadd.f32 %v880, 1.0
    %v884 = vadd.f32 %v882, 1.0
    %v885 = vrcp.pop %v883
    %v886 = vmul.f32 %v883, %v885
    %v887 = vsub.f32 1.0, %v886
    %v888 = vmul.f32 %v885, %v887
    %v889 = vadd.f32 %v885, %v888
    %vm890 = vweird.f32 %v883
    %vm891 = vweird.f32 %v885
    %vm892 = vmor %vm890, %vm891
    %v893 = vsel %vm892, %v885, %v889
    %v894 = vand.u32 2147483647, %v883
    %vm895 = vcmp.eq.f32.partialorder %v894, 8.507059e+37
    %v896 = vand.u32 %v883, 2147483648
    %v897 = vor.u32 1.1754944e-38, %v896
    %v898 = vsel %vm895, %v897, %v893
    %v899 = vmul.f32 1.0, %v898
    %v900 = vrcp.pop %v884
    %v901 = vmul.f32 %v884, %v900
    %v902 = vsub.f32 1.0, %v901
    %v903 = vmul.f32 %v900, %v902
    %v904 = vadd.f32 %v900, %v903
    %vm905 = vweird.f32 %v884
    %vm906 = vweird.f32 %v900
    %vm907 = vmor %vm905, %vm906
    %v908 = vsel %vm907, %v900, %v904
    %v909 = vand.u32 2147483647, %v884
    %vm910 = vcmp.eq.f32.partialorder %v909, 8.507059e+37
    %v911 = vand.u32 %v884, 2147483648
    %v912 = vor.u32 1.1754944e-38, %v911
    %v913 = vsel %vm910, %v912, %v908
    %v914 = vmul.f32 1.0, %v913
    %v915 = vmul.f32 %v914, 2.0
    %v916 = vsub.f32 %v915, 1.0
    %v918 = vrot.slane %v828, 6
    %v920 = vmul.f32 %v899, %v918
    %922 = vrot.lane.b32.xlu0 %v916, 64
    %v923 = vpop.permute.xlu0 %922
    %v925 = vmul.f32 %v899, %v923
    %927 = vrot.lane.b32.xlu0 %v925, 64
    %v928 = vpop.permute.xlu0 %927
    %v930 = vadd.f32 %v920, %v928
    %v931 = vtanh.pop %v930
    %933 = vrot.lane.b32.xlu0 %v931, 64
    %v934 = vpop.permute.xlu0 %933
    %v936 = vmul.f32 %v914, %v934
    %vm937 = vcmp.gt.f32.partialorder %v936, 0.0
    %v938 = vmul.f32 %v936, 0.01
    %v939 = vsel %vm937, %v936, %v938
    %v940 = vld [vmem:[%s4] sm:$0xff]
    %v941 = vld [vmem:[%s4 + $0x8] sm:$0xff]
    %v942 = vld [vmem:[%s4 + $0x10] sm:$0xff]
    %v943 = vld [vmem:[%s4 + $0x18] sm:$0xff]
    %v944 = vld [vmem:[%s4 + $0x20] sm:$0xff]
    %v945 = vld [vmem:[%s4 + $0x28] sm:$0xff]
    %v946 = vld [vmem:[%s4 + $0x30] sm:$0xff]
    %v947 = vld [vmem:[%s4 + $0x38] sm:$0xff]
    %v948 = vld [vmem:[%s5] sm:$0x1]
    %v950 = vperm.slane %v948, 0
    %v953 = vrot.slane %v939, 6
    %v954 = vsel %vm144, %v953, 0
    %956 = vmatpush.msra.mxu0 0.0
    %957 = vmatpush.msra.mxu0 0.0
    %958 = vmatpush.msra.mxu0 0.0
    %959 = vmatpush.msra.mxu0 0.0
    %960 = vmatpush.msra.mxu0 0.0
    %961 = vmatpush.msra.mxu0 0.0
    %962 = vmatpush.msra.mxu0 0.0
    %963 = vmatpush.msra.mxu0 0.0
    %964 = vmatpush.msra.mxu0 %v947
    %965 = vmatpush.msra.mxu0 %v946
    %966 = vmatpush.msra.mxu0 %v945
    %967 = vmatpush.msra.mxu0 %v944
    %968 = vmatpush.msra.mxu0 %v943
    %969 = vmatpush.msra.mxu0 %v942
    %970 = vmatpush.msra.mxu0 %v941
    %971 = vmatpush.msra.mxu0 %v940
    %972 = vmatmul.f32.gmra.mxu0 %v954
    %v973 = vpop.f32.mrf.mxu0
    %v974 = vadd.f32 %v950, %v973
    %975 = vdwg.mxu0
    %vm976 = vcmask 25600
    %977 = vst.msk [vmem:[#allocation3] sm:$0x3] %vm976, %v974
    // Predicated region
    $region26: #{qnetwork_forward.1} parent=1 // pred_check
      _
    $region27: #{qnetwork_forward.1} parent=1 // pred_check_branch
      %979 = sbr.rel (0) target = $region29
    $region28: #{qnetwork_forward.1} parent=1 // pred_region
      %981 = vsyncadd [#allocation4], 0
      %s983 = sshll.u32 [#allocation3], 4
      %s984 = int_to_ptr.vmem [resolvable:$true] %s983
      %s985 = sshll.u32 %s6, 4
      %s986 = int_to_ptr.hbm [resolvable:$true] %s985
      %988 = dma.vmem_to_hbm [thread:$0]  %s984, 32, %s986, [#allocation4]
    $region29: #{qnetwork_forward.1} parent=1 // pred_fallthru
      _
    // Predicated region
    $region30: #{qnetwork_forward.1} parent=1 // pred_check
      _
    $region31: #{qnetwork_forward.1} parent=1 // pred_check_branch
      %990 = sbr.rel (0) target = $region33
    $region32: #{qnetwork_forward.1} parent=1 // pred_region
      %992 = dma.done [#allocation4], 32
    $region33: #{qnetwork_forward.1} parent=1 // pred_fallthru
      _
    %993 = vsyncpa [#allocation4], 1

</llo_original>
